<compile_context>
chip_gen: v5e
topology: v5e:2x2
jax: 0.10.0
libtpu: 0.0.40
codegen_flags: <defaults>
</compile_context>

<pallas_src>
import jax
import jax.numpy as jnp
from jax.experimental import pallas as pl
from jax.experimental.pallas import tpu as pltpu

FC_UNIT = 1024
_MAX_TILE_N = 512          # safe under v5e's 16 MiB default scoped VMEM; fine on v6e/v7x


def _refine_kernel(xin_ref, x3_ref, x1p_ref, w1p_ref, b1_ref,
                   w2p_ref, b2p_ref, mask_ref, out_ref):
    """One row-tile of post_refine.

    xin_ref : (tn, T*V*5) f32   block-concat [x flat ; x_1 flat] (matches w1p row order)
    x3_ref  : (tn, T*V*3) f32   x flattened (channel-last)
    x1p_ref : (tn, T*V*3) f32   x_1 zero-padded to the x channel layout
    w1p_ref : (T*V*5, 1024) bf16  W1 permuted to [x rows ; x_1 rows]
    b1_ref  : (1, 1024) f32
    w2p_ref : (1024, T*V*3) bf16  W2 with output columns scattered to the x layout
    b2p_ref : (1, T*V*3) f32
    mask_ref: (1, T*V*3) f32      1.0 at xy channels, 0.0 at z channels
    out_ref : (tn, T*V*3) f32     complete x_out rows
    """
    # fc1 + ReLU: single merged matmul (bf16 operands, f32 MXU accumulation).
    h = jnp.dot(xin_ref[...].astype(jnp.bfloat16), w1p_ref[...],
                preferred_element_type=jnp.float32)
    h = jnp.maximum(h + b1_ref[...], 0.0)
    # nn.Dropout(0.5) is identity at inference time.

    # fc2 + sigmoid: resident canonical-orientation weight -> no per-step transpose;
    # score arrives already scattered into the (T*V*3) x-channel/output layout.
    s = jnp.dot(h.astype(jnp.bfloat16), w2p_ref[...],
                preferred_element_type=jnp.float32)
    score = jax.nn.sigmoid(s + b2p_ref[...])

    # Blend epilogue (f32):
    #   xy channels: score*x + (1-score)*x_1  ==  x + (score-1)*(x - x_1)
    #   z  channel : passes through from x (mask = 0)
    x3 = x3_ref[...]
    x1p = x1p_ref[...]
    out_ref[...] = x3 + mask_ref[...] * (score - 1.0) * (x3 - x1p)


def prepare_params(w1, b1, w2, b2, T, V, matmul_dtype=jnp.bfloat16):
    """One-time weight re-layout (model-load time, not per call)."""
    TV = T * V
    fc_unit = w1.shape[1]
    assert w1.shape == (TV * 5, fc_unit)
    assert w2.shape == (fc_unit, TV * 2)

    # x_in flattened index for joint j is j*5 + c (c<3 -> x channels, c>=3 -> x_1 channels).
    # Permute W1 once into block order [all x rows (TV*3) ; all x_1 rows (TV*2)] so fc1 is a
    # single matmul on a block-concatenated LHS (no interleaved concat, no wasted zero rows).
    w1r = w1.reshape(TV, 5, fc_unit)
    w1x = w1r[:, :3, :].reshape(TV * 3, fc_unit)
    w1x1 = w1r[:, 3:, :].reshape(TV * 2, fc_unit)
    w1p = jnp.concatenate([w1x, w1x1], axis=0).astype(matmul_dtype)   # (TV*5, fc_unit)

    # W2 kept in canonical (fc_unit, out) orientation, output columns scattered to the
    # x-channel layout: column j*3+c holds W2[:, j*2+c] for c<2, z columns are zero.
    w2p = jnp.pad(w2.reshape(fc_unit, TV, 2), ((0, 0), (0, 0), (0, 1)))
    w2p = w2p.reshape(fc_unit, TV * 3).astype(matmul_dtype)

    b1_2d = b1.reshape(1, fc_unit).astype(jnp.float32)
    b2p = jnp.pad(b2.reshape(TV, 2), ((0, 0), (0, 1))).reshape(1, TV * 3).astype(jnp.float32)
    xy_mask = jnp.pad(jnp.ones((TV, 2), jnp.float32),
                      ((0, 0), (0, 1))).reshape(1, TV * 3)

    return dict(w1p=w1p, b1=b1_2d, w2p=w2p, b2p=b2p, xy_mask=xy_mask)


def _round_up(a, b):
    return (a + b - 1) // b * b


def _pick_tile_n(N):
    if N <= 16:
        return N                                   # single step; block == full rows dim
    # >=2 row tiles once N is non-trivial so v7x can shard across both TensorCores;
    # cap at 512 so the f32 hidden block stays well inside v5e's 16 MiB scoped VMEM.
    return min(_MAX_TILE_N, max(8, _round_up(pl.cdiv(N, 2), 8)))


@jax.jit
def post_refine_forward(x, x_1, params):
    """x: (N,T,V,3) f32, x_1: (N,T,V,2) f32 -> x_out: (N,T,V,3) f32."""
    N, T, V, _ = x.shape
    TV = T * V
    TV3, TV5 = TV * 3, TV * 5
    fc_unit = params["b1"].shape[1]

    x3 = x.reshape(N, TV3)                                            # free (bitcast)
    x1f = x_1.reshape(N, TV * 2)
    # Tiny wrapper-side data ops (~TV*8 floats/row): block-concat LHS matching the permuted
    # W1, and x_1 aligned to the x channel layout for the blend.
    xin = jnp.concatenate([x3, x1f], axis=-1)                         # (N, TV5)
    x1p = jnp.pad(x_1, ((0, 0), (0, 0), (0, 0), (0, 1))).reshape(N, TV3)

    tile_n = _pick_tile_n(N)
    grid = (pl.cdiv(N, tile_n),)

    def row_spec(width):                       # row-tiled activations
        return pl.BlockSpec((tile_n, width), lambda i: (i, 0))

    def resident(shape):                       # weights: same block every grid step
        return pl.BlockSpec(shape, lambda i: (0, 0))

    wbytes = params["w1p"].dtype.itemsize
    cost = pl.CostEstimate(
        flops=2 * N * fc_unit * (TV5 + TV3),
        transcendentals=N * TV3,
        bytes_accessed=(TV5 + TV3) * fc_unit * wbytes
                       + (fc_unit + 2 * TV3) * 4
                       + N * (TV5 + 3 * TV3) * 4,
    )

    out_flat = pl.pallas_call(
        _refine_kernel,
        out_shape=jax.ShapeDtypeStruct((N, TV3), jnp.float32),
        grid=grid,
        in_specs=[
            row_spec(TV5),                      # xin  (block-concat [x ; x_1])
            row_spec(TV3),                      # x3
            row_spec(TV3),                      # x1p
            resident((TV5, fc_unit)),           # w1p  (merged fc1 weight)
            resident((1, fc_unit)),             # b1
            resident((fc_unit, TV3)),           # w2p  (canonical, scattered columns)
            resident((1, TV3)),                 # b2p
            resident((1, TV3)),                 # xy mask
        ],
        out_specs=row_spec(TV3),
        compiler_params=pltpu.CompilerParams(dimension_semantics=("parallel",)),
        cost_estimate=cost,
    )(xin, x3, x1p, params["w1p"], params["b1"],
      params["w2p"], params["b2p"], params["xy_mask"])

    return out_flat.reshape(N, T, V, 3)


def _reference(x, x_1, w1, b1, w2, b2, matmul_dtype=jnp.float32, precision=None):
    """Plain-JAX forward matching the PyTorch module (optionally bf16 matmul operands)."""
    N, T, V, _ = x.shape
    x_in = jnp.concatenate([x, x_1], axis=-1).reshape(N, -1)
    h = jnp.dot(x_in.astype(matmul_dtype), w1.astype(matmul_dtype),
                preferred_element_type=jnp.float32, precision=precision) + b1
    h = jnp.maximum(h, 0.0)
    s = jnp.dot(h.astype(matmul_dtype), w2.astype(matmul_dtype),
                preferred_element_type=jnp.float32, precision=precision) + b2
    score = jax.nn.sigmoid(s).reshape(N, T, V, 2)
    return x.at[..., :2].set(score * x[..., :2] + (1.0 - score) * x_1[..., :2])


def _make_inputs(key, N, T, V):
    fc_in = T * V * 5
    fc_out = T * V * 2
    kx, kx1, kw1, kb1, kw2, kb2 = jax.random.split(key, 6)
    x = jax.random.normal(kx, (N, T, V, 3), dtype=jnp.float32)
    x_1 = jax.random.normal(kx1, (N, T, V, 2), dtype=jnp.float32)
    lim1 = 1.0 / jnp.sqrt(jnp.float32(fc_in))
    lim2 = 1.0 / jnp.sqrt(jnp.float32(FC_UNIT))
    w1 = jax.random.uniform(kw1, (fc_in, FC_UNIT), jnp.float32, -lim1, lim1)
    b1 = jax.random.uniform(kb1, (FC_UNIT,), jnp.float32, -lim1, lim1)
    w2 = jax.random.uniform(kw2, (FC_UNIT, fc_out), jnp.float32, -lim2, lim2)
    b2 = jax.random.uniform(kb2, (fc_out,), jnp.float32, -lim2, lim2)
    return x, x_1, w1, b1, w2, b2


def _check(x, x_1, w1, b1, w2, b2, params):
    out = jax.block_until_ready(post_refine_forward(x, x_1, params))
    assert out.shape == x.shape
    # (1) Kernel math check vs a reference with the SAME bf16 operand quantisation.
    ref_bf16 = _reference(x, x_1, w1, b1, w2, b2, matmul_dtype=jnp.bfloat16)
    assert jnp.allclose(out, ref_bf16, atol=1e-3, rtol=1e-3), "mismatch vs bf16-matched ref"
    # (2) Module-semantics check vs the full-f32 reference (bf16 operands -> looser tol).
    ref_f32 = _reference(x, x_1, w1, b1, w2, b2, matmul_dtype=jnp.float32,
                         precision=jax.lax.Precision.HIGHEST)
    assert jnp.allclose(out, ref_f32, atol=2e-2, rtol=2e-2), "mismatch vs f32 reference"
    return out


if __name__ == "__main__":
    # Shapes implied by the module: out_seqlen=1 -> T=1, n_joints=V=8, in_channels=2.
    T, V = 1, 8
    key = jax.random.PRNGKey(0)

    # Small demo batch (N=2): single grid step.
    x, x_1, w1, b1, w2, b2 = _make_inputs(key, 2, T, V)
    params = prepare_params(w1, b1, w2, b2, T, V)      # one-time weight re-layout
    _check(x, x_1, w1, b1, w2, b2, params)

    # Larger batch (N=48): exercises the multi-row-tile grid path (2 parallel tiles).
    xb, xb_1, _, _, _, _ = _make_inputs(jax.random.PRNGKey(1), 48, T, V)
    _check(xb, xb_1, w1, b1, w2, b2, params)

    print("KERNEL_OK")
</pallas_src>

<mosaic_0001>
module attributes {stable_mosaic.version = 11 : i64} {
  func.func @_refine_kernel(%arg0: i32, %arg1: memref<2x40xf32, #tpu.memory_space<vmem>>, %arg2: memref<2x24xf32, #tpu.memory_space<vmem>>, %arg3: memref<2x24xf32, #tpu.memory_space<vmem>>, %arg4: memref<40x1024xbf16, #tpu.memory_space<vmem>>, %arg5: memref<1x1024xf32, #tpu.memory_space<vmem>>, %arg6: memref<1024x24xbf16, #tpu.memory_space<vmem>>, %arg7: memref<1x24xf32, #tpu.memory_space<vmem>>, %arg8: memref<1x24xf32, #tpu.memory_space<vmem>>, %arg9: memref<2x24xf32, #tpu.memory_space<vmem>>) attributes {dimension_semantics = [#tpu.dimension_semantics<parallel>], iteration_bounds = array<i64: 1>, scalar_prefetch = 0 : i64, scratch_operands = 0 : i64, tpu.core_type = #tpu.core_type<tc>, window_params = [{transform_indices = @transform_0, window_bounds = array<i64: 2, 40>}, {transform_indices = @transform_1, window_bounds = array<i64: 2, 24>}, {transform_indices = @transform_2, window_bounds = array<i64: 2, 24>}, {pipeline_mode = #tpu.pipeline_mode<synchronous>, transform_indices = @transform_3, window_bounds = array<i64: 40, 1024>}, {pipeline_mode = #tpu.pipeline_mode<synchronous>, transform_indices = @transform_4, window_bounds = array<i64: 1, 1024>}, {pipeline_mode = #tpu.pipeline_mode<synchronous>, transform_indices = @transform_5, window_bounds = array<i64: 1024, 24>}, {pipeline_mode = #tpu.pipeline_mode<synchronous>, transform_indices = @transform_6, window_bounds = array<i64: 1, 24>}, {pipeline_mode = #tpu.pipeline_mode<synchronous>, transform_indices = @transform_7, window_bounds = array<i64: 1, 24>}, {transform_indices = @transform_8, window_bounds = array<i64: 2, 24>}]} {
    %c0 = arith.constant 0 : index
    %c0_0 = arith.constant 0 : index
    %0 = vector.load %arg1[%c0, %c0_0] : memref<2x40xf32, #tpu.memory_space<vmem>>, vector<2x40xf32>
    %1 = arith.truncf %0 : vector<2x40xf32> to vector<2x40xbf16>
    %c0_1 = arith.constant 0 : index
    %c0_2 = arith.constant 0 : index
    %2 = vector.load %arg4[%c0_1, %c0_2] : memref<40x1024xbf16, #tpu.memory_space<vmem>>, vector<40x1024xbf16>
    %cst = arith.constant dense<0.000000e+00> : vector<2x1024xf32>
    %3 = tpu.matmul %1, %2, %cst {dimension_numbers = #tpu.dot_dimension_numbers<[1], [0], [0], [1], [0, 0, 1, 1], [], []>} : vector<2x40xbf16>, vector<40x1024xbf16>, vector<2x1024xf32> -> vector<2x1024xf32>
    %c0_3 = arith.constant 0 : index
    %c0_4 = arith.constant 0 : index
    %4 = vector.load %arg5[%c0_3, %c0_4] : memref<1x1024xf32, #tpu.memory_space<vmem>>, vector<1x1024xf32>
    %5 = vector.broadcast %4 : vector<1x1024xf32> to vector<2x1024xf32>
    %6 = arith.addf %3, %5 : vector<2x1024xf32>
    %cst_5 = arith.constant 0.000000e+00 : f32
    %7 = vector.broadcast %cst_5 : f32 to vector<2x1024xf32>
    %8 = arith.maximumf %6, %7 : vector<2x1024xf32>
    %9 = arith.truncf %8 : vector<2x1024xf32> to vector<2x1024xbf16>
    %c0_6 = arith.constant 0 : index
    %c0_7 = arith.constant 0 : index
    %10 = vector.load %arg6[%c0_6, %c0_7] : memref<1024x24xbf16, #tpu.memory_space<vmem>>, vector<1024x24xbf16>
    %cst_8 = arith.constant dense<0.000000e+00> : vector<2x24xf32>
    %11 = tpu.matmul %9, %10, %cst_8 {dimension_numbers = #tpu.dot_dimension_numbers<[1], [0], [0], [1], [0, 0, 1, 1], [], []>} : vector<2x1024xbf16>, vector<1024x24xbf16>, vector<2x24xf32> -> vector<2x24xf32>
    %c0_9 = arith.constant 0 : index
    %c0_10 = arith.constant 0 : index
    %12 = vector.load %arg7[%c0_9, %c0_10] : memref<1x24xf32, #tpu.memory_space<vmem>>, vector<1x24xf32>
    %13 = vector.broadcast %12 : vector<1x24xf32> to vector<2x24xf32>
    %14 = arith.addf %11, %13 : vector<2x24xf32>
    %15 = arith.negf %14 : vector<2x24xf32>
    %16 = math.exp %15 : vector<2x24xf32>
    %cst_11 = arith.constant 1.000000e+00 : f32
    %17 = vector.broadcast %cst_11 : f32 to vector<2x24xf32>
    %18 = arith.addf %17, %16 : vector<2x24xf32>
    %19 = arith.divf %17, %18 : vector<2x24xf32>
    %c0_12 = arith.constant 0 : index
    %c0_13 = arith.constant 0 : index
    %20 = vector.load %arg2[%c0_12, %c0_13] : memref<2x24xf32, #tpu.memory_space<vmem>>, vector<2x24xf32>
    %c0_14 = arith.constant 0 : index
    %c0_15 = arith.constant 0 : index
    %21 = vector.load %arg3[%c0_14, %c0_15] : memref<2x24xf32, #tpu.memory_space<vmem>>, vector<2x24xf32>
    %c0_16 = arith.constant 0 : index
    %c0_17 = arith.constant 0 : index
    %22 = vector.load %arg8[%c0_16, %c0_17] : memref<1x24xf32, #tpu.memory_space<vmem>>, vector<1x24xf32>
    %cst_18 = arith.constant 1.000000e+00 : f32
    %23 = vector.broadcast %cst_18 : f32 to vector<2x24xf32>
    %24 = arith.subf %19, %23 : vector<2x24xf32>
    %25 = vector.broadcast %22 : vector<1x24xf32> to vector<2x24xf32>
    %26 = arith.mulf %25, %24 : vector<2x24xf32>
    %27 = arith.subf %20, %21 : vector<2x24xf32>
    %28 = arith.mulf %26, %27 : vector<2x24xf32>
    %29 = arith.addf %20, %28 : vector<2x24xf32>
    %c0_19 = arith.constant 0 : index
    %c0_20 = arith.constant 0 : index
    %30 = vector.load %arg9[%c0_19, %c0_20] : memref<2x24xf32, #tpu.memory_space<vmem>>, vector<2x24xf32>
    tpu.vector_store %arg9[%c0_19, %c0_20], %29 {strides = array<i32>} : memref<2x24xf32, #tpu.memory_space<vmem>>, vector<2x24xf32>,
    return
  }
  func.func @transform_0(%arg0: i32) -> (i32, i32) {
    %c0_i32 = arith.constant 0 : i32
    %c0_i32_0 = arith.constant 0 : i32
    return %arg0, %c0_i32 : i32, i32
  }
  func.func @transform_1(%arg0: i32) -> (i32, i32) {
    %c0_i32 = arith.constant 0 : i32
    %c0_i32_0 = arith.constant 0 : i32
    return %arg0, %c0_i32 : i32, i32
  }
  func.func @transform_2(%arg0: i32) -> (i32, i32) {
    %c0_i32 = arith.constant 0 : i32
    %c0_i32_0 = arith.constant 0 : i32
    return %arg0, %c0_i32 : i32, i32
  }
  func.func @transform_3(%arg0: i32) -> (i32, i32) {
    %c0_i32 = arith.constant 0 : i32
    %c0_i32_0 = arith.constant 0 : i32
    %c0_i32_1 = arith.constant 0 : i32
    return %c0_i32, %c0_i32_0 : i32, i32
  }
  func.func @transform_4(%arg0: i32) -> (i32, i32) {
    %c0_i32 = arith.constant 0 : i32
    %c0_i32_0 = arith.constant 0 : i32
    %c0_i32_1 = arith.constant 0 : i32
    return %c0_i32, %c0_i32_0 : i32, i32
  }
  func.func @transform_5(%arg0: i32) -> (i32, i32) {
    %c0_i32 = arith.constant 0 : i32
    %c0_i32_0 = arith.constant 0 : i32
    %c0_i32_1 = arith.constant 0 : i32
    return %c0_i32, %c0_i32_0 : i32, i32
  }
  func.func @transform_6(%arg0: i32) -> (i32, i32) {
    %c0_i32 = arith.constant 0 : i32
    %c0_i32_0 = arith.constant 0 : i32
    %c0_i32_1 = arith.constant 0 : i32
    return %c0_i32, %c0_i32_0 : i32, i32
  }
  func.func @transform_7(%arg0: i32) -> (i32, i32) {
    %c0_i32 = arith.constant 0 : i32
    %c0_i32_0 = arith.constant 0 : i32
    %c0_i32_1 = arith.constant 0 : i32
    return %c0_i32, %c0_i32_0 : i32, i32
  }
  func.func @transform_8(%arg0: i32) -> (i32, i32) {
    %c0_i32 = arith.constant 0 : i32
    %c0_i32_0 = arith.constant 0 : i32
    return %arg0, %c0_i32 : i32, i32
  }
}

</mosaic_0001>

<llo_original>
// kernel: post_refine_forward.1
$region0: #{post_refine_forward.1}
  #allocation0 [shape = 'u32[]', space=smem, size = 0x4, offset = 0x4, fixed_abs, tag = 'smem constant byte address 0x4 - core index']
  #allocation1 [shape = 'u32[72,128]{1,0:T(1,128)}', space=vmem, size = 0x9000, scoped, tag = 'internal scratch']
  %s0 = inlined_call_operand.vmem [shape: f32[2,40], index: 0, kind: input, shape index: {}]
  %s1 = inlined_call_operand.vmem [shape: f32[2,24], index: 1, kind: input, shape index: {}]
  %s2 = inlined_call_operand.vmem [shape: f32[2,24], index: 2, kind: input, shape index: {}]
  %s3 = inlined_call_operand.vmem [shape: bf16[40,1024], index: 3, kind: input, shape index: {}]
  %s4 = inlined_call_operand.vmem [shape: f32[1,1024], index: 4, kind: input, shape index: {}]
  %s5 = inlined_call_operand.vmem [shape: bf16[1024,24], index: 5, kind: input, shape index: {}]
  %s6 = inlined_call_operand.vmem [shape: f32[1,24], index: 6, kind: input, shape index: {}]
  %s7 = inlined_call_operand.vmem [shape: f32[1,24], index: 7, kind: input, shape index: {}]
  %s8 = inlined_call_operand.vmem [shape: f32[2,24], index: 8, kind: output, shape index: {}]
  %s9 = sld [smem:[#allocation0]]
  $region42: #{post_refine_forward.1} parent=0
    _
  %s11 = ssub.s32 1, %s9
  %s12 = scalar_select 0, %s11, %s9
  // Predicated region
  $region2: #{post_refine_forward.1} parent=0 // pred_check
    _
  $region3: #{post_refine_forward.1} parent=0 // pred_check_branch
    %14 = sbr.rel (0) target = $region5
  $region4: #{post_refine_forward.1} parent=0 // pred_region
    _
  $region5: #{post_refine_forward.1} parent=0 // pred_fallthru
    _
  // Predicated region
  $region6: #{post_refine_forward.1} parent=0 // pred_check
    _
  $region7: #{post_refine_forward.1} parent=0 // pred_check_branch
    %16 = sbr.rel (0) target = $region9
  $region8: #{post_refine_forward.1} parent=0 // pred_region
    _
  $region9: #{post_refine_forward.1} parent=0 // pred_fallthru
    _
  // Predicated region
  $region10: #{post_refine_forward.1} parent=0 // pred_check
    _
  $region11: #{post_refine_forward.1} parent=0 // pred_check_branch
    %18 = sbr.rel (0) target = $region13
  $region12: #{post_refine_forward.1} parent=0 // pred_region
    _
  $region13: #{post_refine_forward.1} parent=0 // pred_fallthru
    _
  // Predicated region
  $region14: #{post_refine_forward.1} parent=0 // pred_check
    _
  $region15: #{post_refine_forward.1} parent=0 // pred_check_branch
    %20 = sbr.rel (0) target = $region17
  $region16: #{post_refine_forward.1} parent=0 // pred_region
    _
  $region17: #{post_refine_forward.1} parent=0 // pred_fallthru
    _
  // Predicated region
  $region18: #{post_refine_forward.1} parent=0 // pred_check
    _
  $region19: #{post_refine_forward.1} parent=0 // pred_check_branch
    %22 = sbr.rel (0) target = $region21
  $region20: #{post_refine_forward.1} parent=0 // pred_region
    _
  $region21: #{post_refine_forward.1} parent=0 // pred_fallthru
    _
  // Predicated region
  $region22: #{post_refine_forward.1} parent=0 // pred_check
    _
  $region23: #{post_refine_forward.1} parent=0 // pred_check_branch
    %24 = sbr.rel (0) target = $region25
  $region24: #{post_refine_forward.1} parent=0 // pred_region
    _
  $region25: #{post_refine_forward.1} parent=0 // pred_fallthru
    _
  // Predicated region
  $region26: #{post_refine_forward.1} parent=0 // pred_check
    _
  $region27: #{post_refine_forward.1} parent=0 // pred_check_branch
    %26 = sbr.rel (0) target = $region29
  $region28: #{post_refine_forward.1} parent=0 // pred_region
    _
  $region29: #{post_refine_forward.1} parent=0 // pred_fallthru
    _
  // Predicated region
  $region30: #{post_refine_forward.1} parent=0 // pred_check
    _
  $region31: #{post_refine_forward.1} parent=0 // pred_check_branch
    %28 = sbr.rel (0) target = $region33
  $region32: #{post_refine_forward.1} parent=0 // pred_region
    _
  $region33: #{post_refine_forward.1} parent=0 // pred_fallthru
    _
  %v30 = vld [vmem:[%s0] sm:$0x3]
  %v31 = vpack.c.bf16 %v30, %v30
  %v32 = vld [vmem:[%s3] sm:$0xff]
  %v33 = vld [vmem:[%s3 + $0x8] sm:$0xff]
  %v34 = vld [vmem:[%s3 + $0x10] sm:$0xff]
  %v35 = vld [vmem:[%s3 + $0x18] sm:$0xff]
  %v36 = vld [vmem:[%s3 + $0x20] sm:$0xff]
  %v37 = vld [vmem:[%s3 + $0x28] sm:$0xff]
  %v38 = vld [vmem:[%s3 + $0x30] sm:$0xff]
  %v39 = vld [vmem:[%s3 + $0x38] sm:$0xff]
  %v40 = vld [vmem:[%s3 + $0x40] sm:$0xff]
  %v41 = vld [vmem:[%s3 + $0x48] sm:$0xff]
  %v42 = vld [vmem:[%s3 + $0x50] sm:$0xff]
  %v43 = vld [vmem:[%s3 + $0x58] sm:$0xff]
  %v44 = vld [vmem:[%s3 + $0x60] sm:$0xff]
  %v45 = vld [vmem:[%s3 + $0x68] sm:$0xff]
  %v46 = vld [vmem:[%s3 + $0x70] sm:$0xff]
  %v47 = vld [vmem:[%s3 + $0x78] sm:$0xff]
  %v48 = vld [vmem:[%s3 + $0x80] sm:$0xff]
  %v49 = vld [vmem:[%s3 + $0x88] sm:$0xff]
  %v50 = vld [vmem:[%s3 + $0x90] sm:$0xff]
  %v51 = vld [vmem:[%s3 + $0x98] sm:$0xff]
  %v52 = vld [vmem:[%s4] sm:$0xff]
  %v54 = vperm.slane %v52, 0
  %v55 = vperm.slane %v52, 1
  %v56 = vperm.slane %v52, 2
  %v57 = vperm.slane %v52, 3
  %v58 = vperm.slane %v52, 4
  %v59 = vperm.slane %v52, 5
  %v60 = vperm.slane %v52, 6
  %v61 = vperm.slane %v52, 7
  %v90 = vunpack.c.l.b16 %v32
  %v91 = vunpack.c.h.b16 %v32
  %v92 = vunpack.c.l.b16 %v33
  %v93 = vunpack.c.h.b16 %v33
  %v94 = vunpack.c.l.b16 %v34
  %v95 = vunpack.c.h.b16 %v34
  %v96 = vunpack.c.l.b16 %v35
  %v97 = vunpack.c.h.b16 %v35
  %v98 = vunpack.c.l.b16 %v36
  %v99 = vunpack.c.h.b16 %v36
  %v100 = vunpack.c.l.b16 %v37
  %v101 = vunpack.c.h.b16 %v37
  %v102 = vunpack.c.l.b16 %v38
  %v103 = vunpack.c.h.b16 %v38
  %v104 = vunpack.c.l.b16 %v39
  %v105 = vunpack.c.h.b16 %v39
  %v106 = vunpack.c.l.b16 %v40
  %v107 = vunpack.c.h.b16 %v40
  %v108 = vunpack.c.l.b16 %v41
  %v109 = vunpack.c.h.b16 %v41
  %v110 = vunpack.c.l.b16 %v42
  %v111 = vunpack.c.h.b16 %v42
  %v112 = vunpack.c.l.b16 %v43
  %v113 = vunpack.c.h.b16 %v43
  %v114 = vunpack.c.l.b16 %v44
  %v115 = vunpack.c.h.b16 %v44
  %v116 = vunpack.c.l.b16 %v45
  %v117 = vunpack.c.h.b16 %v45
  %v118 = vunpack.c.l.b16 %v46
  %v119 = vunpack.c.h.b16 %v46
  %v120 = vunpack.c.l.b16 %v47
  %v121 = vunpack.c.h.b16 %v47
  %v122 = vunpack.c.l.b16 %v48
  %v123 = vunpack.c.h.b16 %v48
  %v124 = vunpack.c.l.b16 %v49
  %v125 = vunpack.c.h.b16 %v49
  %v126 = vunpack.c.l.b16 %v50
  %v127 = vunpack.c.h.b16 %v50
  %v128 = vunpack.c.l.b16 %v51
  %v129 = vunpack.c.h.b16 %v51
  %v130 = vpack.c.b16 %v98, %v90
  %v131 = vpack.c.b16 %v99, %v91
  %v132 = vpack.c.b16 %v100, %v92
  %v133 = vpack.c.b16 %v101, %v93
  %v134 = vpack.c.b16 %v102, %v94
  %v135 = vpack.c.b16 %v103, %v95
  %v136 = vpack.c.b16 %v104, %v96
  %v137 = vpack.c.b16 %v105, %v97
  %v138 = vpack.c.b16 %v114, %v106
  %v139 = vpack.c.b16 %v115, %v107
  %v140 = vpack.c.b16 %v116, %v108
  %v141 = vpack.c.b16 %v117, %v109
  %v142 = vpack.c.b16 %v118, %v110
  %v143 = vpack.c.b16 %v119, %v111
  %v144 = vpack.c.b16 %v120, %v112
  %v145 = vpack.c.b16 %v121, %v113
  %v146 = vpack.c.b16 %v122, %v122
  %v147 = vpack.c.b16 %v123, %v123
  %v148 = vpack.c.b16 %v124, %v124
  %v149 = vpack.c.b16 %v125, %v125
  %v150 = vpack.c.b16 %v126, %v126
  %v151 = vpack.c.b16 %v127, %v127
  %v152 = vpack.c.b16 %v128, %v128
  %v153 = vpack.c.b16 %v129, %v129
  %vm170 = vcmask 326656
  %v172 = vsel %vm170, %v31, 0
  %vm174 = vcmask 1043456
  %v176 = vsel %vm174, %v146, 0
  %v179 = vsel %vm174, %v147, 0
  %v182 = vsel %vm174, %v148, 0
  %v185 = vsel %vm174, %v149, 0
  %v188 = vsel %vm174, %v150, 0
  %v191 = vsel %vm174, %v151, 0
  %v194 = vsel %vm174, %v152, 0
  %v197 = vsel %vm174, %v153, 0
  %199 = vmatpush.bf16.msra.mxu0 0
  %200 = vmatpush.bf16.msra.mxu0 0
  %201 = vmatpush.bf16.msra.mxu0 0
  %202 = vmatpush.bf16.msra.mxu0 0
  %203 = vmatpush.bf16.msra.mxu0 0
  %204 = vmatpush.bf16.msra.mxu0 %v176
  %205 = vmatpush.bf16.msra.mxu0 %v138
  %206 = vmatpush.bf16.msra.mxu0 %v130
  %207 = vmatmul.bf16.gmra.mxu0 %v172
  %v208 = vpop.f32.mrf.mxu0
  %v209 = vadd.f32 %v54, %v208
  %v210 = vpop.f32.mrf.mxu0
  %211 = vdwg.mxu0
  %212 = vmatpush.bf16.msra.mxu0 0
  %213 = vmatpush.bf16.msra.mxu0 0
  %214 = vmatpush.bf16.msra.mxu0 0
  %215 = vmatpush.bf16.msra.mxu0 0
  %216 = vmatpush.bf16.msra.mxu0 0
  %217 = vmatpush.bf16.msra.mxu0 %v179
  %218 = vmatpush.bf16.msra.mxu0 %v139
  %219 = vmatpush.bf16.msra.mxu0 %v131
  %220 = vmatmul.bf16.gmra.mxu0 %v172
  %v221 = vpop.f32.mrf.mxu0
  %v222 = vadd.f32 %v55, %v221
  %v223 = vpop.f32.mrf.mxu0
  %224 = vdwg.mxu0
  %225 = vmatpush.bf16.msra.mxu0 0
  %226 = vmatpush.bf16.msra.mxu0 0
  %227 = vmatpush.bf16.msra.mxu0 0
  %228 = vmatpush.bf16.msra.mxu0 0
  %229 = vmatpush.bf16.msra.mxu0 0
  %230 = vmatpush.bf16.msra.mxu0 %v182
  %231 = vmatpush.bf16.msra.mxu0 %v140
  %232 = vmatpush.bf16.msra.mxu0 %v132
  %233 = vmatmul.bf16.gmra.mxu0 %v172
  %v234 = vpop.f32.mrf.mxu0
  %v235 = vadd.f32 %v56, %v234
  %v236 = vpop.f32.mrf.mxu0
  %237 = vdwg.mxu0
  %238 = vmatpush.bf16.msra.mxu0 0
  %239 = vmatpush.bf16.msra.mxu0 0
  %240 = vmatpush.bf16.msra.mxu0 0
  %241 = vmatpush.bf16.msra.mxu0 0
  %242 = vmatpush.bf16.msra.mxu0 0
  %243 = vmatpush.bf16.msra.mxu0 %v185
  %244 = vmatpush.bf16.msra.mxu0 %v141
  %245 = vmatpush.bf16.msra.mxu0 %v133
  %246 = vmatmul.bf16.gmra.mxu0 %v172
  %v247 = vpop.f32.mrf.mxu0
  %v248 = vadd.f32 %v57, %v247
  %v249 = vpop.f32.mrf.mxu0
  %250 = vdwg.mxu0
  %251 = vmatpush.bf16.msra.mxu0 0
  %252 = vmatpush.bf16.msra.mxu0 0
  %253 = vmatpush.bf16.msra.mxu0 0
  %254 = vmatpush.bf16.msra.mxu0 0
  %255 = vmatpush.bf16.msra.mxu0 0
  %256 = vmatpush.bf16.msra.mxu0 %v188
  %257 = vmatpush.bf16.msra.mxu0 %v142
  %258 = vmatpush.bf16.msra.mxu0 %v134
  %259 = vmatmul.bf16.gmra.mxu0 %v172
  %v260 = vpop.f32.mrf.mxu0
  %v261 = vadd.f32 %v58, %v260
  %v262 = vpop.f32.mrf.mxu0
  %263 = vdwg.mxu0
  %264 = vmatpush.bf16.msra.mxu0 0
  %265 = vmatpush.bf16.msra.mxu0 0
  %266 = vmatpush.bf16.msra.mxu0 0
  %267 = vmatpush.bf16.msra.mxu0 0
  %268 = vmatpush.bf16.msra.mxu0 0
  %269 = vmatpush.bf16.msra.mxu0 %v191
  %270 = vmatpush.bf16.msra.mxu0 %v143
  %271 = vmatpush.bf16.msra.mxu0 %v135
  %272 = vmatmul.bf16.gmra.mxu0 %v172
  %v273 = vpop.f32.mrf.mxu0
  %v274 = vadd.f32 %v59, %v273
  %v275 = vpop.f32.mrf.mxu0
  %276 = vdwg.mxu0
  %277 = vmatpush.bf16.msra.mxu0 0
  %278 = vmatpush.bf16.msra.mxu0 0
  %279 = vmatpush.bf16.msra.mxu0 0
  %280 = vmatpush.bf16.msra.mxu0 0
  %281 = vmatpush.bf16.msra.mxu0 0
  %282 = vmatpush.bf16.msra.mxu0 %v194
  %283 = vmatpush.bf16.msra.mxu0 %v144
  %284 = vmatpush.bf16.msra.mxu0 %v136
  %285 = vmatmul.bf16.gmra.mxu0 %v172
  %v286 = vpop.f32.mrf.mxu0
  %v287 = vadd.f32 %v60, %v286
  %v288 = vpop.f32.mrf.mxu0
  %289 = vdwg.mxu0
  %290 = vmatpush.bf16.msra.mxu0 0
  %291 = vmatpush.bf16.msra.mxu0 0
  %292 = vmatpush.bf16.msra.mxu0 0
  %293 = vmatpush.bf16.msra.mxu0 0
  %294 = vmatpush.bf16.msra.mxu0 0
  %295 = vmatpush.bf16.msra.mxu0 %v197
  %296 = vmatpush.bf16.msra.mxu0 %v145
  %297 = vmatpush.bf16.msra.mxu0 %v137
  %298 = vmatmul.bf16.gmra.mxu0 %v172
  %v299 = vpop.f32.mrf.mxu0
  %v300 = vadd.f32 %v61, %v299
  %v301 = vpop.f32.mrf.mxu0
  %302 = vdwg.mxu0
  %v303 = vmax.f32 %v209, 0.0
  %v304 = vmax.f32 %v222, 0.0
  %v305 = vmax.f32 %v235, 0.0
  %v306 = vmax.f32 %v248, 0.0
  %v307 = vmax.f32 %v261, 0.0
  %v308 = vmax.f32 %v274, 0.0
  %v309 = vmax.f32 %v287, 0.0
  %v310 = vmax.f32 %v300, 0.0
  %v311 = vpack.c.bf16 %v303, %v303
  %v312 = vpack.c.bf16 %v304, %v304
  %v313 = vpack.c.bf16 %v305, %v305
  %v314 = vpack.c.bf16 %v306, %v306
  %v315 = vpack.c.bf16 %v307, %v307
  %v316 = vpack.c.bf16 %v308, %v308
  %v317 = vpack.c.bf16 %v309, %v309
  %v318 = vpack.c.bf16 %v310, %v310
  %v319 = vld [vmem:[%s5] sm:$0xf]
  %v320 = vld [vmem:[%s5 + $0x4] sm:$0xf]
  %v321 = vld [vmem:[%s5 + $0x8] sm:$0xf]
  %v322 = vld [vmem:[%s5 + $0xc] sm:$0xf]
  %v323 = vld [vmem:[%s5 + $0x10] sm:$0xf]
  %v324 = vld [vmem:[%s5 + $0x14] sm:$0xf]
  %v325 = vld [vmem:[%s5 + $0x18] sm:$0xf]
  %v326 = vld [vmem:[%s5 + $0x1c] sm:$0xf]
  %v327 = vld [vmem:[%s5 + $0x20] sm:$0xf]
  %v328 = vld [vmem:[%s5 + $0x24] sm:$0xf]
  %v329 = vld [vmem:[%s5 + $0x28] sm:$0xf]
  %v330 = vld [vmem:[%s5 + $0x2c] sm:$0xf]
  %v331 = vld [vmem:[%s5 + $0x30] sm:$0xf]
  %v332 = vld [vmem:[%s5 + $0x34] sm:$0xf]
  %v333 = vld [vmem:[%s5 + $0x38] sm:$0xf]
  %v334 = vld [vmem:[%s5 + $0x3c] sm:$0xf]
  %v335 = vld [vmem:[%s5 + $0x40] sm:$0xf]
  %v336 = vld [vmem:[%s5 + $0x44] sm:$0xf]
  %v337 = vld [vmem:[%s5 + $0x48] sm:$0xf]
  %v338 = vld [vmem:[%s5 + $0x4c] sm:$0xf]
  %v339 = vld [vmem:[%s5 + $0x50] sm:$0xf]
  %v340 = vld [vmem:[%s5 + $0x54] sm:$0xf]
  %v341 = vld [vmem:[%s5 + $0x58] sm:$0xf]
  %v342 = vld [vmem:[%s5 + $0x5c] sm:$0xf]
  %v343 = vld [vmem:[%s5 + $0x60] sm:$0xf]
  %v344 = vld [vmem:[%s5 + $0x64] sm:$0xf]
  %v345 = vld [vmem:[%s5 + $0x68] sm:$0xf]
  %v346 = vld [vmem:[%s5 + $0x6c] sm:$0xf]
  %v347 = vld [vmem:[%s5 + $0x70] sm:$0xf]
  %v348 = vld [vmem:[%s5 + $0x74] sm:$0xf]
  %v349 = vld [vmem:[%s5 + $0x78] sm:$0xf]
  %v350 = vld [vmem:[%s5 + $0x7c] sm:$0xf]
  %v351 = vld [vmem:[%s5 + $0x80] sm:$0xf]
  %v352 = vld [vmem:[%s5 + $0x84] sm:$0xf]
  %v353 = vld [vmem:[%s5 + $0x88] sm:$0xf]
  %v354 = vld [vmem:[%s5 + $0x8c] sm:$0xf]
  %v355 = vld [vmem:[%s5 + $0x90] sm:$0xf]
  %v356 = vld [vmem:[%s5 + $0x94] sm:$0xf]
  %v357 = vld [vmem:[%s5 + $0x98] sm:$0xf]
  %v358 = vld [vmem:[%s5 + $0x9c] sm:$0xf]
  %v359 = vld [vmem:[%s5 + $0xa0] sm:$0xf]
  %v360 = vld [vmem:[%s5 + $0xa4] sm:$0xf]
  %v361 = vld [vmem:[%s5 + $0xa8] sm:$0xf]
  %v362 = vld [vmem:[%s5 + $0xac] sm:$0xf]
  %v363 = vld [vmem:[%s5 + $0xb0] sm:$0xf]
  %v364 = vld [vmem:[%s5 + $0xb4] sm:$0xf]
  %v365 = vld [vmem:[%s5 + $0xb8] sm:$0xf]
  %v366 = vld [vmem:[%s5 + $0xbc] sm:$0xf]
  %v367 = vld [vmem:[%s5 + $0xc0] sm:$0xf]
  %v368 = vld [vmem:[%s5 + $0xc4] sm:$0xf]
  %v369 = vld [vmem:[%s5 + $0xc8] sm:$0xf]
  %v370 = vld [vmem:[%s5 + $0xcc] sm:$0xf]
  %v371 = vld [vmem:[%s5 + $0xd0] sm:$0xf]
  %v372 = vld [vmem:[%s5 + $0xd4] sm:$0xf]
  %v373 = vld [vmem:[%s5 + $0xd8] sm:$0xf]
  %v374 = vld [vmem:[%s5 + $0xdc] sm:$0xf]
  %v375 = vld [vmem:[%s5 + $0xe0] sm:$0xf]
  %v376 = vld [vmem:[%s5 + $0xe4] sm:$0xf]
  %v377 = vld [vmem:[%s5 + $0xe8] sm:$0xf]
  %v378 = vld [vmem:[%s5 + $0xec] sm:$0xf]
  %v379 = vld [vmem:[%s5 + $0xf0] sm:$0xf]
  %v380 = vld [vmem:[%s5 + $0xf4] sm:$0xf]
  %v381 = vld [vmem:[%s5 + $0xf8] sm:$0xf]
  %v382 = vld [vmem:[%s5 + $0xfc] sm:$0xf]
  %v383 = vld [vmem:[%s5 + $0x100] sm:$0xf]
  %v384 = vld [vmem:[%s5 + $0x104] sm:$0xf]
  %v385 = vld [vmem:[%s5 + $0x108] sm:$0xf]
  %v386 = vld [vmem:[%s5 + $0x10c] sm:$0xf]
  %v387 = vld [vmem:[%s5 + $0x110] sm:$0xf]
  %v388 = vld [vmem:[%s5 + $0x114] sm:$0xf]
  %v389 = vld [vmem:[%s5 + $0x118] sm:$0xf]
  %v390 = vld [vmem:[%s5 + $0x11c] sm:$0xf]
  %v391 = vld [vmem:[%s5 + $0x120] sm:$0xf]
  %v392 = vld [vmem:[%s5 + $0x124] sm:$0xf]
  %v393 = vld [vmem:[%s5 + $0x128] sm:$0xf]
  %v394 = vld [vmem:[%s5 + $0x12c] sm:$0xf]
  %v395 = vld [vmem:[%s5 + $0x130] sm:$0xf]
  %v396 = vld [vmem:[%s5 + $0x134] sm:$0xf]
  %v397 = vld [vmem:[%s5 + $0x138] sm:$0xf]
  %v398 = vld [vmem:[%s5 + $0x13c] sm:$0xf]
  %v399 = vld [vmem:[%s5 + $0x140] sm:$0xf]
  %v400 = vld [vmem:[%s5 + $0x144] sm:$0xf]
  %v401 = vld [vmem:[%s5 + $0x148] sm:$0xf]
  %v402 = vld [vmem:[%s5 + $0x14c] sm:$0xf]
  %v403 = vld [vmem:[%s5 + $0x150] sm:$0xf]
  %v404 = vld [vmem:[%s5 + $0x154] sm:$0xf]
  %v405 = vld [vmem:[%s5 + $0x158] sm:$0xf]
  %v406 = vld [vmem:[%s5 + $0x15c] sm:$0xf]
  %v407 = vld [vmem:[%s5 + $0x160] sm:$0xf]
  %v408 = vld [vmem:[%s5 + $0x164] sm:$0xf]
  %v409 = vld [vmem:[%s5 + $0x168] sm:$0xf]
  %v410 = vld [vmem:[%s5 + $0x16c] sm:$0xf]
  %v411 = vld [vmem:[%s5 + $0x170] sm:$0xf]
  %v412 = vld [vmem:[%s5 + $0x174] sm:$0xf]
  %v413 = vld [vmem:[%s5 + $0x178] sm:$0xf]
  %v414 = vld [vmem:[%s5 + $0x17c] sm:$0xf]
  %v415 = vld [vmem:[%s5 + $0x180] sm:$0xf]
  %v416 = vld [vmem:[%s5 + $0x184] sm:$0xf]
  %v417 = vld [vmem:[%s5 + $0x188] sm:$0xf]
  %v418 = vld [vmem:[%s5 + $0x18c] sm:$0xf]
  %v419 = vld [vmem:[%s5 + $0x190] sm:$0xf]
  %v420 = vld [vmem:[%s5 + $0x194] sm:$0xf]
  %v421 = vld [vmem:[%s5 + $0x198] sm:$0xf]
  %v422 = vld [vmem:[%s5 + $0x19c] sm:$0xf]
  %v423 = vld [vmem:[%s5 + $0x1a0] sm:$0xf]
  %v424 = vld [vmem:[%s5 + $0x1a4] sm:$0xf]
  %v425 = vld [vmem:[%s5 + $0x1a8] sm:$0xf]
  %v426 = vld [vmem:[%s5 + $0x1ac] sm:$0xf]
  %v427 = vld [vmem:[%s5 + $0x1b0] sm:$0xf]
  %v428 = vld [vmem:[%s5 + $0x1b4] sm:$0xf]
  %v429 = vld [vmem:[%s5 + $0x1b8] sm:$0xf]
  %v430 = vld [vmem:[%s5 + $0x1bc] sm:$0xf]
  %v431 = vld [vmem:[%s5 + $0x1c0] sm:$0xf]
  %v432 = vld [vmem:[%s5 + $0x1c4] sm:$0xf]
  %v433 = vld [vmem:[%s5 + $0x1c8] sm:$0xf]
  %v434 = vld [vmem:[%s5 + $0x1cc] sm:$0xf]
  %v435 = vld [vmem:[%s5 + $0x1d0] sm:$0xf]
  %v436 = vld [vmem:[%s5 + $0x1d4] sm:$0xf]
  %v437 = vld [vmem:[%s5 + $0x1d8] sm:$0xf]
  %v438 = vld [vmem:[%s5 + $0x1dc] sm:$0xf]
  %v439 = vld [vmem:[%s5 + $0x1e0] sm:$0xf]
  %v440 = vld [vmem:[%s5 + $0x1e4] sm:$0xf]
  %v441 = vld [vmem:[%s5 + $0x1e8] sm:$0xf]
  %v442 = vld [vmem:[%s5 + $0x1ec] sm:$0xf]
  %v443 = vld [vmem:[%s5 + $0x1f0] sm:$0xf]
  %v444 = vld [vmem:[%s5 + $0x1f4] sm:$0xf]
  %v445 = vld [vmem:[%s5 + $0x1f8] sm:$0xf]
  %v446 = vld [vmem:[%s5 + $0x1fc] sm:$0xf]
  %v447 = vld [vmem:[%s6] sm:$0x1]
  %v449 = vperm.slane %v447, 0
  %v579 = vunpack.c.l.b16 %v319
  %v580 = vunpack.c.l.b16 %v320
  %v581 = vunpack.c.l.b16 %v321
  %v582 = vunpack.c.l.b16 %v322
  %v583 = vunpack.c.l.b16 %v323
  %v584 = vunpack.c.l.b16 %v324
  %v585 = vunpack.c.l.b16 %v325
  %v586 = vunpack.c.l.b16 %v326
  %v587 = vunpack.c.l.b16 %v327
  %v588 = vunpack.c.l.b16 %v328
  %v589 = vunpack.c.l.b16 %v329
  %v590 = vunpack.c.l.b16 %v330
  %v591 = vunpack.c.l.b16 %v331
  %v592 = vunpack.c.l.b16 %v332
  %v593 = vunpack.c.l.b16 %v333
  %v594 = vunpack.c.l.b16 %v334
  %v595 = vunpack.c.l.b16 %v335
  %v596 = vunpack.c.l.b16 %v336
  %v597 = vunpack.c.l.b16 %v337
  %v598 = vunpack.c.l.b16 %v338
  %v599 = vunpack.c.l.b16 %v339
  %v600 = vunpack.c.l.b16 %v340
  %v601 = vunpack.c.l.b16 %v341
  %v602 = vunpack.c.l.b16 %v342
  %v603 = vunpack.c.l.b16 %v343
  %v604 = vunpack.c.l.b16 %v344
  %v605 = vunpack.c.l.b16 %v345
  %v606 = vunpack.c.l.b16 %v346
  %v607 = vunpack.c.l.b16 %v347
  %v608 = vunpack.c.l.b16 %v348
  %v609 = vunpack.c.l.b16 %v349
  %v610 = vunpack.c.l.b16 %v350
  %v611 = vunpack.c.l.b16 %v351
  %v612 = vunpack.c.l.b16 %v352
  %v613 = vunpack.c.l.b16 %v353
  %v614 = vunpack.c.l.b16 %v354
  %v615 = vunpack.c.l.b16 %v355
  %v616 = vunpack.c.l.b16 %v356
  %v617 = vunpack.c.l.b16 %v357
  %v618 = vunpack.c.l.b16 %v358
  %v619 = vunpack.c.l.b16 %v359
  %v620 = vunpack.c.l.b16 %v360
  %v621 = vunpack.c.l.b16 %v361
  %v622 = vunpack.c.l.b16 %v362
  %v623 = vunpack.c.l.b16 %v363
  %v624 = vunpack.c.l.b16 %v364
  %v625 = vunpack.c.l.b16 %v365
  %v626 = vunpack.c.l.b16 %v366
  %v627 = vunpack.c.l.b16 %v367
  %v628 = vunpack.c.l.b16 %v368
  %v629 = vunpack.c.l.b16 %v369
  %v630 = vunpack.c.l.b16 %v370
  %v631 = vunpack.c.l.b16 %v371
  %v632 = vunpack.c.l.b16 %v372
  %v633 = vunpack.c.l.b16 %v373
  %v634 = vunpack.c.l.b16 %v374
  %v635 = vunpack.c.l.b16 %v375
  %v636 = vunpack.c.l.b16 %v376
  %v637 = vunpack.c.l.b16 %v377
  %v638 = vunpack.c.l.b16 %v378
  %v639 = vunpack.c.l.b16 %v379
  %v640 = vunpack.c.l.b16 %v380
  %v641 = vunpack.c.l.b16 %v381
  %v642 = vunpack.c.l.b16 %v382
  %v643 = vunpack.c.l.b16 %v383
  %v644 = vunpack.c.l.b16 %v384
  %v645 = vunpack.c.l.b16 %v385
  %v646 = vunpack.c.l.b16 %v386
  %v647 = vunpack.c.l.b16 %v387
  %v648 = vunpack.c.l.b16 %v388
  %v649 = vunpack.c.l.b16 %v389
  %v650 = vunpack.c.l.b16 %v390
  %v651 = vunpack.c.l.b16 %v391
  %v652 = vunpack.c.l.b16 %v392
  %v653 = vunpack.c.l.b16 %v393
  %v654 = vunpack.c.l.b16 %v394
  %v655 = vunpack.c.l.b16 %v395
  %v656 = vunpack.c.l.b16 %v396
  %v657 = vunpack.c.l.b16 %v397
  %v658 = vunpack.c.l.b16 %v398
  %v659 = vunpack.c.l.b16 %v399
  %v660 = vunpack.c.l.b16 %v400
  %v661 = vunpack.c.l.b16 %v401
  %v662 = vunpack.c.l.b16 %v402
  %v663 = vunpack.c.l.b16 %v403
  %v664 = vunpack.c.l.b16 %v404
  %v665 = vunpack.c.l.b16 %v405
  %v666 = vunpack.c.l.b16 %v406
  %v667 = vunpack.c.l.b16 %v407
  %v668 = vunpack.c.l.b16 %v408
  %v669 = vunpack.c.l.b16 %v409
  %v670 = vunpack.c.l.b16 %v410
  %v671 = vunpack.c.l.b16 %v411
  %v672 = vunpack.c.l.b16 %v412
  %v673 = vunpack.c.l.b16 %v413
  %v674 = vunpack.c.l.b16 %v414
  %v675 = vunpack.c.l.b16 %v415
  %v676 = vunpack.c.l.b16 %v416
  %v677 = vunpack.c.l.b16 %v417
  %v678 = vunpack.c.l.b16 %v418
  %v679 = vunpack.c.l.b16 %v419
  %v680 = vunpack.c.l.b16 %v420
  %v681 = vunpack.c.l.b16 %v421
  %v682 = vunpack.c.l.b16 %v422
  %v683 = vunpack.c.l.b16 %v423
  %v684 = vunpack.c.l.b16 %v424
  %v685 = vunpack.c.l.b16 %v425
  %v686 = vunpack.c.l.b16 %v426
  %v687 = vunpack.c.l.b16 %v427
  %v688 = vunpack.c.l.b16 %v428
  %v689 = vunpack.c.l.b16 %v429
  %v690 = vunpack.c.l.b16 %v430
  %v691 = vunpack.c.l.b16 %v431
  %v692 = vunpack.c.l.b16 %v432
  %v693 = vunpack.c.l.b16 %v433
  %v694 = vunpack.c.l.b16 %v434
  %v695 = vunpack.c.l.b16 %v435
  %v696 = vunpack.c.l.b16 %v436
  %v697 = vunpack.c.l.b16 %v437
  %v698 = vunpack.c.l.b16 %v438
  %v699 = vunpack.c.l.b16 %v439
  %v700 = vunpack.c.l.b16 %v440
  %v701 = vunpack.c.l.b16 %v441
  %v702 = vunpack.c.l.b16 %v442
  %v703 = vunpack.c.l.b16 %v443
  %v704 = vunpack.c.l.b16 %v444
  %v705 = vunpack.c.l.b16 %v445
  %v706 = vunpack.c.l.b16 %v446
  %v707 = vpack.c.b16 %v580, %v579
  %v708 = vpack.c.b16 %v582, %v581
  %v709 = vpack.c.b16 %v584, %v583
  %v710 = vpack.c.b16 %v586, %v585
  %v711 = vpack.c.b16 %v588, %v587
  %v712 = vpack.c.b16 %v590, %v589
  %v713 = vpack.c.b16 %v592, %v591
  %v714 = vpack.c.b16 %v594, %v593
  %v715 = vpack.c.b16 %v596, %v595
  %v716 = vpack.c.b16 %v598, %v597
  %v717 = vpack.c.b16 %v600, %v599
  %v718 = vpack.c.b16 %v602, %v601
  %v719 = vpack.c.b16 %v604, %v603
  %v720 = vpack.c.b16 %v606, %v605
  %v721 = vpack.c.b16 %v608, %v607
  %v722 = vpack.c.b16 %v610, %v609
  %v723 = vpack.c.b16 %v612, %v611
  %v724 = vpack.c.b16 %v614, %v613
  %v725 = vpack.c.b16 %v616, %v615
  %v726 = vpack.c.b16 %v618, %v617
  %v727 = vpack.c.b16 %v620, %v619
  %v728 = vpack.c.b16 %v622, %v621
  %v729 = vpack.c.b16 %v624, %v623
  %v730 = vpack.c.b16 %v626, %v625
  %v731 = vpack.c.b16 %v628, %v627
  %v732 = vpack.c.b16 %v630, %v629
  %v733 = vpack.c.b16 %v632, %v631
  %v734 = vpack.c.b16 %v634, %v633
  %v735 = vpack.c.b16 %v636, %v635
  %v736 = vpack.c.b16 %v638, %v637
  %v737 = vpack.c.b16 %v640, %v639
  %v738 = vpack.c.b16 %v642, %v641
  %v739 = vpack.c.b16 %v644, %v643
  %v740 = vpack.c.b16 %v646, %v645
  %v741 = vpack.c.b16 %v648, %v647
  %v742 = vpack.c.b16 %v650, %v649
  %v743 = vpack.c.b16 %v652, %v651
  %v744 = vpack.c.b16 %v654, %v653
  %v745 = vpack.c.b16 %v656, %v655
  %v746 = vpack.c.b16 %v658, %v657
  %v747 = vpack.c.b16 %v660, %v659
  %v748 = vpack.c.b16 %v662, %v661
  %v749 = vpack.c.b16 %v664, %v663
  %v750 = vpack.c.b16 %v666, %v665
  %v751 = vpack.c.b16 %v668, %v667
  %v752 = vpack.c.b16 %v670, %v669
  %v753 = vpack.c.b16 %v672, %v671
  %v754 = vpack.c.b16 %v674, %v673
  %v755 = vpack.c.b16 %v676, %v675
  %v756 = vpack.c.b16 %v678, %v677
  %v757 = vpack.c.b16 %v680, %v679
  %v758 = vpack.c.b16 %v682, %v681
  %v759 = vpack.c.b16 %v684, %v683
  %v760 = vpack.c.b16 %v686, %v685
  %v761 = vpack.c.b16 %v688, %v687
  %v762 = vpack.c.b16 %v690, %v689
  %v763 = vpack.c.b16 %v692, %v691
  %v764 = vpack.c.b16 %v694, %v693
  %v765 = vpack.c.b16 %v696, %v695
  %v766 = vpack.c.b16 %v698, %v697
  %v767 = vpack.c.b16 %v700, %v699
  %v768 = vpack.c.b16 %v702, %v701
  %v769 = vpack.c.b16 %v704, %v703
  %v770 = vpack.c.b16 %v706, %v705
  %835 = vmatpush.bf16.msra.mxu0 %v714
  %836 = vmatpush.bf16.msra.mxu0 %v713
  %837 = vmatpush.bf16.msra.mxu0 %v712
  %838 = vmatpush.bf16.msra.mxu0 %v711
  %839 = vmatpush.bf16.msra.mxu0 %v710
  %840 = vmatpush.bf16.msra.mxu0 %v709
  %841 = vmatpush.bf16.msra.mxu0 %v708
  %842 = vmatpush.bf16.msra.mxu0 %v707
  %843 = vmatmul.bf16.gmra.mxu0 %v311
  %v844 = vpop.f32.mrf.mxu0
  %v845 = vadd.f32 %v449, %v844
  %v846 = vpop.f32.mrf.mxu0
  %847 = vdwg.mxu0
  %848 = vmatpush.bf16.msra.mxu0 %v722
  %849 = vmatpush.bf16.msra.mxu0 %v721
  %850 = vmatpush.bf16.msra.mxu0 %v720
  %851 = vmatpush.bf16.msra.mxu0 %v719
  %852 = vmatpush.bf16.msra.mxu0 %v718
  %853 = vmatpush.bf16.msra.mxu0 %v717
  %854 = vmatpush.bf16.msra.mxu0 %v716
  %855 = vmatpush.bf16.msra.mxu0 %v715
  %856 = vmatmul.bf16.gmra.mxu0 %v312
  %v857 = vpop.f32.mrf.mxu0
  %v858 = vadd.f32 %v845, %v857
  %v859 = vpop.f32.mrf.mxu0
  %860 = vdwg.mxu0
  %861 = vmatpush.bf16.msra.mxu0 %v730
  %862 = vmatpush.bf16.msra.mxu0 %v729
  %863 = vmatpush.bf16.msra.mxu0 %v728
  %864 = vmatpush.bf16.msra.mxu0 %v727
  %865 = vmatpush.bf16.msra.mxu0 %v726
  %866 = vmatpush.bf16.msra.mxu0 %v725
  %867 = vmatpush.bf16.msra.mxu0 %v724
  %868 = vmatpush.bf16.msra.mxu0 %v723
  %869 = vmatmul.bf16.gmra.mxu0 %v313
  %v870 = vpop.f32.mrf.mxu0
  %v871 = vadd.f32 %v858, %v870
  %v872 = vpop.f32.mrf.mxu0
  %873 = vdwg.mxu0
  %874 = vmatpush.bf16.msra.mxu0 %v738
  %875 = vmatpush.bf16.msra.mxu0 %v737
  %876 = vmatpush.bf16.msra.mxu0 %v736
  %877 = vmatpush.bf16.msra.mxu0 %v735
  %878 = vmatpush.bf16.msra.mxu0 %v734
  %879 = vmatpush.bf16.msra.mxu0 %v733
  %880 = vmatpush.bf16.msra.mxu0 %v732
  %881 = vmatpush.bf16.msra.mxu0 %v731
  %882 = vmatmul.bf16.gmra.mxu0 %v314
  %v883 = vpop.f32.mrf.mxu0
  %v884 = vadd.f32 %v871, %v883
  %v885 = vpop.f32.mrf.mxu0
  %886 = vdwg.mxu0
  %887 = vmatpush.bf16.msra.mxu0 %v746
  %888 = vmatpush.bf16.msra.mxu0 %v745
  %889 = vmatpush.bf16.msra.mxu0 %v744
  %890 = vmatpush.bf16.msra.mxu0 %v743
  %891 = vmatpush.bf16.msra.mxu0 %v742
  %892 = vmatpush.bf16.msra.mxu0 %v741
  %893 = vmatpush.bf16.msra.mxu0 %v740
  %894 = vmatpush.bf16.msra.mxu0 %v739
  %895 = vmatmul.bf16.gmra.mxu0 %v315
  %v896 = vpop.f32.mrf.mxu0
  %v897 = vadd.f32 %v884, %v896
  %v898 = vpop.f32.mrf.mxu0
  %899 = vdwg.mxu0
  %900 = vmatpush.bf16.msra.mxu0 %v754
  %901 = vmatpush.bf16.msra.mxu0 %v753
  %902 = vmatpush.bf16.msra.mxu0 %v752
  %903 = vmatpush.bf16.msra.mxu0 %v751
  %904 = vmatpush.bf16.msra.mxu0 %v750
  %905 = vmatpush.bf16.msra.mxu0 %v749
  %906 = vmatpush.bf16.msra.mxu0 %v748
  %907 = vmatpush.bf16.msra.mxu0 %v747
  %908 = vmatmul.bf16.gmra.mxu0 %v316
  %v909 = vpop.f32.mrf.mxu0
  %v910 = vadd.f32 %v897, %v909
  %v911 = vpop.f32.mrf.mxu0
  %912 = vdwg.mxu0
  %913 = vmatpush.bf16.msra.mxu0 %v762
  %914 = vmatpush.bf16.msra.mxu0 %v761
  %915 = vmatpush.bf16.msra.mxu0 %v760
  %916 = vmatpush.bf16.msra.mxu0 %v759
  %917 = vmatpush.bf16.msra.mxu0 %v758
  %918 = vmatpush.bf16.msra.mxu0 %v757
  %919 = vmatpush.bf16.msra.mxu0 %v756
  %920 = vmatpush.bf16.msra.mxu0 %v755
  %921 = vmatmul.bf16.gmra.mxu0 %v317
  %v922 = vpop.f32.mrf.mxu0
  %v923 = vadd.f32 %v910, %v922
  %v924 = vpop.f32.mrf.mxu0
  %925 = vdwg.mxu0
  %926 = vmatpush.bf16.msra.mxu0 %v770
  %927 = vmatpush.bf16.msra.mxu0 %v769
  %928 = vmatpush.bf16.msra.mxu0 %v768
  %929 = vmatpush.bf16.msra.mxu0 %v767
  %930 = vmatpush.bf16.msra.mxu0 %v766
  %931 = vmatpush.bf16.msra.mxu0 %v765
  %932 = vmatpush.bf16.msra.mxu0 %v764
  %933 = vmatpush.bf16.msra.mxu0 %v763
  %934 = vmatmul.bf16.gmra.mxu0 %v318
  %v935 = vpop.f32.mrf.mxu0
  %v936 = vadd.f32 %v923, %v935
  %v937 = vpop.f32.mrf.mxu0
  %938 = vdwg.mxu0
  %v939 = vxor.u32 %v936, 2147483648
  %v940 = vmul.f32 %v939, 1.442695
  %v941 = vpow.pop %v940
  %v942 = vadd.f32 %v941, 1.0
  %v943 = vrcp.pop %v942
  %v944 = vmul.f32 %v942, %v943
  %v945 = vsub.f32 1.0, %v944
  %v946 = vmul.f32 %v943, %v945
  %v947 = vadd.f32 %v943, %v946
  %vm948 = vweird.f32 %v942
  %vm949 = vweird.f32 %v943
  %vm950 = vmor %vm948, %vm949
  %v951 = vsel %vm950, %v943, %v947
  %v952 = vand.u32 2147483647, %v942
  %vm953 = vcmp.eq.f32.partialorder %v952, 8.507059e+37
  %v954 = vand.u32 %v942, 2147483648
  %v955 = vor.u32 1.1754944e-38, %v954
  %v956 = vsel %vm953, %v955, %v951
  %v957 = vmul.f32 1.0, %v956
  %v958 = vld [vmem:[%s1] sm:$0x3]
  %v959 = vld [vmem:[%s2] sm:$0x3]
  %v960 = vld [vmem:[%s7] sm:$0x1]
  %v961 = vsub.f32 %v957, 1.0
  %v963 = vperm.slane %v960, 0
  %v965 = vmul.f32 %v963, %v961
  %v966 = vsub.f32 %v958, %v959
  %v967 = vmul.f32 %v965, %v966
  %v968 = vadd.f32 %v958, %v967
  %vm969 = vcmask 189440
  %970 = vst.msk [vmem:[%s8] sm:$0x3] %vm969, %v968
  // Predicated region
  $region34: #{post_refine_forward.1} parent=0 // pred_check
    _
  $region35: #{post_refine_forward.1} parent=0 // pred_check_branch
    %972 = sbr.rel (0) target = $region37
  $region36: #{post_refine_forward.1} parent=0 // pred_region
    _
  $region37: #{post_refine_forward.1} parent=0 // pred_fallthru
    _
  // Predicated region
  $region38: #{post_refine_forward.1} parent=0 // pred_check
    _
  $region39: #{post_refine_forward.1} parent=0 // pred_check_branch
    %974 = sbr.rel (0) target = $region41
  $region40: #{post_refine_forward.1} parent=0 // pred_region
    _
  $region41: #{post_refine_forward.1} parent=0 // pred_fallthru
    _

</llo_original>
